<compile_context>
chip_gen: v6e
topology: v6e:2x2x1
jax: 0.10.0
libtpu: 0.0.40
codegen_flags: <defaults>
</compile_context>

<pallas_src>
import functools

import jax
import jax.numpy as jnp
from jax.experimental import pallas as pl
from jax.experimental.pallas import tpu as pltpu

IN_FEATURES = 784
OUT_FEATURES = 10
# Kronecker factorization: 784 = 28 * 28, 10 = 1 * 10
A1, B1 = 28, 28   # input factors  (A1 * B1 = 784)
A2, B2 = 1, 10    # output factors (A2 * B2 = 10)

N_PAD = 128       # lane-dense class axis (10 real classes + 118 padded lanes)


def _round_up(x, m):
    return ((x + m - 1) // m) * m


def kron_linear_softmax_kernel(x_ref, w_ref, b_ref, o_ref):
    # x_ref: (bm, 784) f32     w_ref: (784, 128) bf16
    # b_ref: (1, 128)  f32 (-inf in the 118 padded lanes; the padded W columns
    #                       are exactly zero, so -inf + 0 keeps those lanes at
    #                       -inf and exp() kills them below)
    # o_ref: (bm, 128) bf16
    x = x_ref[...].astype(jnp.bfloat16)          # cast in-kernel (no HBM copy)
    y = jnp.dot(x, w_ref[...], preferred_element_type=jnp.float32)
    y = y + b_ref[...]
    # softmax over the class axis (PyTorch dim=1)
    y = y - jnp.max(y, axis=-1, keepdims=True)
    e = jnp.exp(y)
    denom = jnp.sum(e, axis=-1, keepdims=True)
    # Exact division (NOT approx reciprocal): rows must sum to 1.  Memory-bound
    # kernel, so the exact recip costs nothing.
    o_ref[...] = (e / denom).astype(o_ref.dtype)


def init_params(key, rank_rate=1):
    """Deterministic synthetic parameters for KronLinear(784, 10)."""
    rank = max(1, int(4 * rank_rate))
    k1, k2, k3, k4 = jax.random.split(key, 4)
    a = jax.random.normal(k1, (rank, A1, A2), jnp.float32) * 0.1
    b = jax.random.normal(k2, (rank, B1, B2), jnp.float32) * 0.1
    s = jax.random.normal(k3, (A1, A2), jnp.float32)           # structured_sparse mask
    bias = jax.random.normal(k4, (OUT_FEATURES,), jnp.float32) * 0.01
    return {"a": a, "b": b, "s": s, "bias": bias}


def effective_weight(params):
    """W = sum_r (S * A_r) kron B_r  ->  (784, 10). Tiny parameter glue."""
    a_eff = params["a"] * params["s"][None]                    # (rank, A1, A2)
    w = jnp.einsum("rij,rkl->ikjl", a_eff, params["b"])        # (A1, B1, A2, B2)
    return w.reshape(IN_FEATURES, OUT_FEATURES)


@functools.partial(jax.jit, static_argnames=("block_m",))
def kron_layer_forward(x_nchw, params, *, block_m=1024):
    # ---- parameter prep (tiny; fused by jit) ----
    w = effective_weight(params)                               # (784, 10) f32
    w_pad = jnp.zeros((IN_FEATURES, N_PAD), jnp.float32)
    w_pad = w_pad.at[:, :OUT_FEATURES].set(w).astype(jnp.bfloat16)
    bias_pad = jnp.full((1, N_PAD), -jnp.inf, jnp.float32)
    bias_pad = bias_pad.at[0, :OUT_FEATURES].set(params["bias"])

    # ---- activations: x.view(-1, 784); streamed directly, no pad/cast copy ----
    x = x_nchw.reshape(-1, IN_FEATURES)                        # free view of NCHW
    n = x.shape[0]

    # Tile height: f32 sublane multiple (8), capped at block_m, and ~n/2 for
    # moderate batches so the grid has >= 2 steps (lets v7x megacore shard the
    # batch across both TensorCores; harmless on v5e/v6e).  Ragged batches are
    # handled by a partial last block (input overhang rows are garbage but only
    # affect their own softmax row; output overhang writes are dropped).
    bm = min(block_m, max(8, _round_up(-(-n // 2), 8)))
    grid = (pl.cdiv(n, bm),)

    cost = pl.CostEstimate(
        flops=2 * n * IN_FEATURES * N_PAD,
        transcendentals=n * N_PAD,
        bytes_accessed=(n * IN_FEATURES * 4            # x (f32, streamed once)
                        + IN_FEATURES * N_PAD * 2      # W (bf16)
                        + n * N_PAD * 2                # out (bf16)
                        + N_PAD * 4),                  # bias
    )

    out = pl.pallas_call(
        kron_linear_softmax_kernel,
        out_shape=jax.ShapeDtypeStruct((n, N_PAD), jnp.bfloat16),
        grid_spec=pltpu.PrefetchScalarGridSpec(
            num_scalar_prefetch=0,
            grid=grid,
            in_specs=[
                # x tile: (bm, 784) -- sublane multiple of 8; 784 == full last dim
                pl.BlockSpec((bm, IN_FEATURES), lambda i: (i, 0)),
                # full padded weight / bias resident every step
                pl.BlockSpec((IN_FEATURES, N_PAD), lambda i: (0, 0)),
                pl.BlockSpec((1, N_PAD), lambda i: (0, 0)),
            ],
            out_specs=pl.BlockSpec((bm, N_PAD), lambda i: (i, 0)),
        ),
        compiler_params=pltpu.CompilerParams(
            dimension_semantics=("parallel",)),
        cost_estimate=cost,
    )(x, w_pad, bias_pad)

    # Slice back to the 10 real classes (bf16 re-read is small), return f32.
    return out[:, :OUT_FEATURES].astype(jnp.float32)


def reference_forward(x_nchw, params):
    w = effective_weight(params)
    x = x_nchw.reshape(-1, IN_FEATURES).astype(jnp.float32)
    logits = x @ w + params["bias"][None, :]
    return jax.nn.softmax(logits, axis=1)


if __name__ == "__main__":
    key = jax.random.PRNGKey(0)
    kx, kp = jax.random.split(key)
    batch = 16
    x = jax.random.normal(kx, (batch, 1, 28, 28), jnp.float32)   # NCHW, like MNIST
    params = init_params(kp, rank_rate=1)

    out = kron_layer_forward(x, params)
    out = jax.block_until_ready(out)

    ref = reference_forward(x, params)
    assert out.shape == (batch, OUT_FEATURES)
    assert bool(jnp.all(jnp.isfinite(out)))
    # bf16 streaming of W / in-kernel bf16 cast of x -> loosened tolerance.
    assert jnp.allclose(out, ref, atol=2e-2, rtol=2e-2)
    # exact in-kernel division; bf16 output rounding keeps row sums ~1 +/- 2e-3
    assert jnp.allclose(jnp.sum(out, axis=1), 1.0, atol=1e-2)
    print("KERNEL_OK")
</pallas_src>

<mosaic_0001>
module attributes {stable_mosaic.version = 11 : i64} {
  func.func @kron_linear_softmax_kernel(%arg0: i32, %arg1: memref<8x784xf32, #tpu.memory_space<vmem>>, %arg2: memref<784x128xbf16, #tpu.memory_space<vmem>>, %arg3: memref<1x128xf32, #tpu.memory_space<vmem>>, %arg4: memref<8x128xbf16, #tpu.memory_space<vmem>>) attributes {dimension_semantics = [#tpu.dimension_semantics<parallel>], iteration_bounds = array<i64: 2>, scalar_prefetch = 0 : i64, scratch_operands = 0 : i64, tpu.core_type = #tpu.core_type<tc>, window_params = [{transform_indices = @transform_0, window_bounds = array<i64: 8, 784>}, {pipeline_mode = #tpu.pipeline_mode<synchronous>, transform_indices = @transform_1, window_bounds = array<i64: 784, 128>}, {pipeline_mode = #tpu.pipeline_mode<synchronous>, transform_indices = @transform_2, window_bounds = array<i64: 1, 128>}, {transform_indices = @transform_3, window_bounds = array<i64: 8, 128>}]} {
    %c0 = arith.constant 0 : index
    %c0_0 = arith.constant 0 : index
    %0 = vector.load %arg1[%c0, %c0_0] : memref<8x784xf32, #tpu.memory_space<vmem>>, vector<8x784xf32>
    %1 = arith.truncf %0 : vector<8x784xf32> to vector<8x784xbf16>
    %c0_1 = arith.constant 0 : index
    %c0_2 = arith.constant 0 : index
    %2 = vector.load %arg2[%c0_1, %c0_2] : memref<784x128xbf16, #tpu.memory_space<vmem>>, vector<784x128xbf16>
    %cst = arith.constant dense<0.000000e+00> : vector<8x128xf32>
    %3 = tpu.matmul %1, %2, %cst {dimension_numbers = #tpu.dot_dimension_numbers<[1], [0], [0], [1], [0, 0, 1, 1], [], []>} : vector<8x784xbf16>, vector<784x128xbf16>, vector<8x128xf32> -> vector<8x128xf32>
    %c0_3 = arith.constant 0 : index
    %c0_4 = arith.constant 0 : index
    %4 = vector.load %arg3[%c0_3, %c0_4] : memref<1x128xf32, #tpu.memory_space<vmem>>, vector<1x128xf32>
    %5 = vector.broadcast %4 : vector<1x128xf32> to vector<8x128xf32>
    %6 = arith.addf %3, %5 : vector<8x128xf32>
    %cst_5 = arith.constant dense<0xFF800000> : vector<8xf32>
    %7 = vector.multi_reduction <maximumf>, %6, %cst_5 [1] : vector<8x128xf32> to vector<8xf32>
    %8 = vector.shape_cast %7 : vector<8xf32> to vector<8x1xf32>
    %9 = vector.broadcast %8 : vector<8x1xf32> to vector<8x128xf32>
    %10 = arith.subf %6, %9 : vector<8x128xf32>
    %11 = math.exp %10 : vector<8x128xf32>
    %cst_6 = arith.constant dense<0.000000e+00> : vector<8xf32>
    %12 = vector.multi_reduction <add>, %11, %cst_6 [1] : vector<8x128xf32> to vector<8xf32>
    %13 = vector.shape_cast %12 : vector<8xf32> to vector<8x1xf32>
    %14 = vector.broadcast %13 : vector<8x1xf32> to vector<8x128xf32>
    %15 = arith.divf %11, %14 : vector<8x128xf32>
    %16 = arith.truncf %15 : vector<8x128xf32> to vector<8x128xbf16>
    %c0_7 = arith.constant 0 : index
    %c0_8 = arith.constant 0 : index
    %17 = vector.load %arg4[%c0_7, %c0_8] : memref<8x128xbf16, #tpu.memory_space<vmem>>, vector<8x128xbf16>
    tpu.vector_store %arg4[%c0_7, %c0_8], %16 {strides = array<i32>} : memref<8x128xbf16, #tpu.memory_space<vmem>>, vector<8x128xbf16>,
    return
  }
  func.func @transform_0(%arg0: i32) -> (i32, i32) {
    %c0_i32 = arith.constant 0 : i32
    %c0_i32_0 = arith.constant 0 : i32
    return %arg0, %c0_i32 : i32, i32
  }
  func.func @transform_1(%arg0: i32) -> (i32, i32) {
    %c0_i32 = arith.constant 0 : i32
    %c0_i32_0 = arith.constant 0 : i32
    %c0_i32_1 = arith.constant 0 : i32
    return %c0_i32, %c0_i32_0 : i32, i32
  }
  func.func @transform_2(%arg0: i32) -> (i32, i32) {
    %c0_i32 = arith.constant 0 : i32
    %c0_i32_0 = arith.constant 0 : i32
    %c0_i32_1 = arith.constant 0 : i32
    return %c0_i32, %c0_i32_0 : i32, i32
  }
  func.func @transform_3(%arg0: i32) -> (i32, i32) {
    %c0_i32 = arith.constant 0 : i32
    %c0_i32_0 = arith.constant 0 : i32
    return %arg0, %c0_i32 : i32, i32
  }
}

</mosaic_0001>

<llo_original>
// kernel: kron_layer_forward.1
$region0: #{kron_layer_forward.1}
  #allocation0 [shape = 'u32[]', space=smem, size = 0x4, offset = 0x4, fixed_abs, tag = 'smem constant byte address 0x4 - core index']
  #allocation1 [shape = 'u32[144,128]{1,0:T(1,128)}', space=vmem, size = 0x12000, scoped, tag = 'internal scratch']
  %s0 = inlined_call_operand.vmem [shape: f32[16,784], index: 0, kind: input, shape index: {}]
  %s1 = inlined_call_operand.vmem [shape: bf16[784,128], index: 1, kind: input, shape index: {}]
  %s2 = inlined_call_operand.vmem [shape: f32[1,128], index: 2, kind: input, shape index: {}]
  %s3 = inlined_call_operand.vmem [shape: bf16[16,128], index: 3, kind: output, shape index: {}]
  %s4 = sld [smem:[#allocation0]]
  $region45: #{kron_layer_forward.1} parent=0
    _
  %s6 = ssub.s32 1, %s4
  %s7 = scalar_select 0, %s6, %s4
  loop: start=0, step=1, limit=4
  $region2: #{kron_layer_forward.1} parent=0 // loop_pre_header
    _
  $region3: #{kron_layer_forward.1} parent=0 // loop_header
    %s9 = sphi 0, %s13
    %p10 = scmp.ge.s32.totalorder %s9, 4
    %s19 = sphi 0, %s21
    %s22 = sphi 0, %s19
    %s23 = sphi 0, %s22
    %s39 = sphi 0, %s23
    %s43 = sphi 0, %s43
    %s45 = sphi 0, %s43
    %s46 = sphi 0, %s45
    %s60 = sphi 0, %s46
    %s64 = sphi 0, %s64
    %s66 = sphi 0, %s64
    %s67 = sphi 0, %s66
    %s81 = sphi 0, %s67
    %s87 = sphi 0, %s89
    %s90 = sphi 0, %s87
    %s91 = sphi 0, %s90
    %s107 = sphi 0, %s91
  $region4: #{kron_layer_forward.1} parent=0 // loop_header_branch
    %12 = sbr.rel (%p10) target = $region8
  $region5: #{kron_layer_forward.1} parent=0 // loop_body
    %s14 = ssub.s32 %s9, 1
    %s15 = ssub.s32 %s9, 2
    %s16 = sadd.s32 %s9, 1
    %s17 = ssub.s32 %s9, %s16
    %p18 = scmp.eq.s32.totalorder %s17, 0
    %s20 = sadd.s32 %s19, 1
    %s21 = scalar_select %p18, %s19, %s20
    %p24 = pneg %p18
    %p25 = scmp.eq.s32.totalorder %s9, 1
    %p26 = por %p24, %p25
    %p27 = scmp.ne.s32.totalorder %s19, %s22
    %p28 = scmp.eq.s32.totalorder %s9, 0
    %p29 = por %p27, %p28
    %p30 = scmp.ne.s32.totalorder %s19, %s22
    %p31 = scmp.eq.s32.totalorder %s14, 1
    %p32 = por %p30, %p31
    %p33 = scmp.ne.s32.totalorder %s22, %s23
    %p34 = scmp.eq.s32.totalorder %s14, 0
    %p35 = por %p33, %p34
    %p36 = scmp.ne.s32.totalorder %s22, %s23
    %p37 = scmp.eq.s32.totalorder %s15, 1
    %p38 = por %p36, %p37
    %p40 = scmp.ne.s32.totalorder %s23, %s39
    %p41 = scmp.eq.s32.totalorder %s15, 0
    %p42 = por %p40, %p41
    %s44 = sadd.s32 %s43, 1
    %p47 = scmp.eq.s32.totalorder %s9, 1
    %p48 = scmp.ne.s32.totalorder %s43, %s45
    %p49 = scmp.eq.s32.totalorder %s9, 0
    %p50 = por %p48, %p49
    %p51 = scmp.ne.s32.totalorder %s43, %s45
    %p52 = scmp.eq.s32.totalorder %s14, 1
    %p53 = por %p51, %p52
    %p54 = scmp.ne.s32.totalorder %s45, %s46
    %p55 = scmp.eq.s32.totalorder %s14, 0
    %p56 = por %p54, %p55
    %p57 = scmp.ne.s32.totalorder %s45, %s46
    %p58 = scmp.eq.s32.totalorder %s15, 1
    %p59 = por %p57, %p58
    %p61 = scmp.ne.s32.totalorder %s46, %s60
    %p62 = scmp.eq.s32.totalorder %s15, 0
    %p63 = por %p61, %p62
    %s65 = sadd.s32 %s64, 1
    %p68 = scmp.eq.s32.totalorder %s9, 1
    %p69 = scmp.ne.s32.totalorder %s64, %s66
    %p70 = scmp.eq.s32.totalorder %s9, 0
    %p71 = por %p69, %p70
    %p72 = scmp.ne.s32.totalorder %s64, %s66
    %p73 = scmp.eq.s32.totalorder %s14, 1
    %p74 = por %p72, %p73
    %p75 = scmp.ne.s32.totalorder %s66, %s67
    %p76 = scmp.eq.s32.totalorder %s14, 0
    %p77 = por %p75, %p76
    %p78 = scmp.ne.s32.totalorder %s66, %s67
    %p79 = scmp.eq.s32.totalorder %s15, 1
    %p80 = por %p78, %p79
    %p82 = scmp.ne.s32.totalorder %s67, %s81
    %p83 = scmp.eq.s32.totalorder %s15, 0
    %p84 = por %p82, %p83
    %s85 = ssub.s32 %s9, %s16
    %p86 = scmp.eq.s32.totalorder %s85, 0
    %s88 = sadd.s32 %s87, 1
    %s89 = scalar_select %p86, %s87, %s88
    %p92 = pneg %p86
    %p93 = scmp.eq.s32.totalorder %s9, 1
    %p94 = por %p92, %p93
    %p95 = scmp.ne.s32.totalorder %s87, %s90
    %p96 = scmp.eq.s32.totalorder %s9, 0
    %p97 = por %p95, %p96
    %p98 = scmp.ne.s32.totalorder %s87, %s90
    %p99 = scmp.eq.s32.totalorder %s14, 1
    %p100 = por %p98, %p99
    %p101 = scmp.ne.s32.totalorder %s90, %s91
    %p102 = scmp.eq.s32.totalorder %s14, 0
    %p103 = por %p101, %p102
    %p104 = scmp.ne.s32.totalorder %s90, %s91
    %p105 = scmp.eq.s32.totalorder %s15, 1
    %p106 = por %p104, %p105
    %p108 = scmp.ne.s32.totalorder %s91, %s107
    %p109 = scmp.eq.s32.totalorder %s15, 0
    %p110 = por %p108, %p109
    %p111 = scmp.le.s32.totalorder 1, %s9
    %p112 = scmp.lt.s32.totalorder %s9, 3
    %p113 = pnand %p111, %p112
    %p114 = pneg %p113
    // Predicated region
    $region9: #{kron_layer_forward.1} parent=5 // pred_check
      _
    $region10: #{kron_layer_forward.1} parent=5 // pred_check_branch
      %116 = sbr.rel (%p113) target = $region12
    $region11: #{kron_layer_forward.1} parent=5 // pred_region
      %s117 = ssub.s32 %s9, 1
      // Predicated region
      $region13: #{kron_layer_forward.1} parent=11 // pred_check
        %p118 = pneg %p56
      $region14: #{kron_layer_forward.1} parent=11 // pred_check_branch
        %120 = sbr.rel (%p118) target = $region16
      $region15: #{kron_layer_forward.1} parent=11 // pred_region
        _
      $region16: #{kron_layer_forward.1} parent=11 // pred_fallthru
        _
      // Predicated region
      $region17: #{kron_layer_forward.1} parent=11 // pred_check
        %p121 = pneg %p77
      $region18: #{kron_layer_forward.1} parent=11 // pred_check_branch
        %123 = sbr.rel (%p121) target = $region20
      $region19: #{kron_layer_forward.1} parent=11 // pred_region
        _
      $region20: #{kron_layer_forward.1} parent=11 // pred_fallthru
        _
    $region12: #{kron_layer_forward.1} parent=5 // pred_fallthru
      _
    %p124 = scmp.lt.s32.totalorder %s9, 2
    // Predicated region
    $region21: #{kron_layer_forward.1} parent=5 // pred_check
      %p125 = pneg %p124
    $region22: #{kron_layer_forward.1} parent=5 // pred_check_branch
      %127 = sbr.rel (%p125) target = $region24
    $region23: #{kron_layer_forward.1} parent=5 // pred_region
      // Predicated region
      $region25: #{kron_layer_forward.1} parent=23 // pred_check
        %p128 = pneg %p29
      $region26: #{kron_layer_forward.1} parent=23 // pred_check_branch
        %130 = sbr.rel (%p128) target = $region28
      $region27: #{kron_layer_forward.1} parent=23 // pred_region
        %p131 = scmp.lt.s32.totalorder %s9, 1
        %s132 = scalar_select %p131, %s9, 1
        %s133 = smul.addr %s132, 7
        %s134 = smul.addr %s133, 8
        %s135 = scalar_lea.vmem %s0, %s134
      $region28: #{kron_layer_forward.1} parent=23 // pred_fallthru
        _
    $region24: #{kron_layer_forward.1} parent=5 // pred_fallthru
      _
    %p136 = scmp.le.s32.totalorder 1, %s9
    %p137 = scmp.lt.s32.totalorder %s9, 3
    %p138 = pnand %p136, %p137
    %p139 = pneg %p138
    // Predicated region
    $region29: #{kron_layer_forward.1} parent=5 // pred_check
      _
    $region30: #{kron_layer_forward.1} parent=5 // pred_check_branch
      %141 = sbr.rel (%p138) target = $region32
    $region31: #{kron_layer_forward.1} parent=5 // pred_region
      %s142 = ssub.s32 %s9, 1
      %p143 = scmp.lt.s32.totalorder %s14, 1
      %s144 = scalar_select %p143, %s14, 1
      %s145 = smul.addr %s144, 7
      %s146 = smul.addr %s145, 8
      %s147 = scalar_lea.vmem %s0, %s146
      %p148 = pneg %p35
      %p149 = pneg %p32
      %p150 = pneg %p56
      %p151 = pneg %p53
      %p152 = pneg %p77
      %p153 = pneg %p74
      %p154 = pneg %p103
      %p155 = pneg %p100
      %p156 = scmp.lt.s32.totalorder %s14, 1
      %s157 = scalar_select %p156, %s14, 1
      %s158 = smul.addr %s157, 4
      %s159 = scalar_lea.vmem %s3, %s158
      %p160 = scmp.lt.s32.totalorder %s14, 1
      %s161 = scalar_select %p160, %s14, 1
      %s162 = smul.addr %s161, 7
      %s163 = smul.addr %s162, 8
      %s164 = scalar_lea.vmem %s0, %s163
      %p165 = scmp.lt.s32.totalorder %s14, 1
      %s166 = scalar_select %p165, %s14, 1
      %s167 = smul.addr %s166, 4
      %s168 = scalar_lea.vmem %s3, %s167
      %v170 = vld [vmem:[%s164] sm:$0xff]
      %v171 = vld [vmem:[%s164 + $0x8] sm:$0xff]
      %v172 = vld [vmem:[%s164 + $0x10] sm:$0xff]
      %v173 = vld [vmem:[%s164 + $0x18] sm:$0xff]
      %v174 = vld [vmem:[%s164 + $0x20] sm:$0xff]
      %v175 = vld [vmem:[%s164 + $0x28] sm:$0xff]
      %v176 = vld [vmem:[%s164 + $0x30] sm:$0xff]
      %v177 = vpack.c.bf16 %v170, %v170
      %v178 = vpack.c.bf16 %v171, %v171
      %v179 = vpack.c.bf16 %v172, %v172
      %v180 = vpack.c.bf16 %v173, %v173
      %v181 = vpack.c.bf16 %v174, %v174
      %v182 = vpack.c.bf16 %v175, %v175
      %v183 = vpack.c.bf16 %v176, %v176
      %v184 = vld [vmem:[%s1] sm:$0xf]
      %v185 = vld [vmem:[%s1 + $0x4] sm:$0xf]
      %v186 = vld [vmem:[%s1 + $0x8] sm:$0xf]
      %v187 = vld [vmem:[%s1 + $0xc] sm:$0xf]
      %v188 = vld [vmem:[%s1 + $0x10] sm:$0xf]
      %v189 = vld [vmem:[%s1 + $0x14] sm:$0xf]
      %v190 = vld [vmem:[%s1 + $0x18] sm:$0xf]
      %v191 = vld [vmem:[%s1 + $0x1c] sm:$0xf]
      %v192 = vld [vmem:[%s1 + $0x20] sm:$0xf]
      %v193 = vld [vmem:[%s1 + $0x24] sm:$0xf]
      %v194 = vld [vmem:[%s1 + $0x28] sm:$0xf]
      %v195 = vld [vmem:[%s1 + $0x2c] sm:$0xf]
      %v196 = vld [vmem:[%s1 + $0x30] sm:$0xf]
      %v197 = vld [vmem:[%s1 + $0x34] sm:$0xf]
      %v198 = vld [vmem:[%s1 + $0x38] sm:$0xf]
      %v199 = vld [vmem:[%s1 + $0x3c] sm:$0xf]
      %v200 = vld [vmem:[%s1 + $0x40] sm:$0xf]
      %v201 = vld [vmem:[%s1 + $0x44] sm:$0xf]
      %v202 = vld [vmem:[%s1 + $0x48] sm:$0xf]
      %v203 = vld [vmem:[%s1 + $0x4c] sm:$0xf]
      %v204 = vld [vmem:[%s1 + $0x50] sm:$0xf]
      %v205 = vld [vmem:[%s1 + $0x54] sm:$0xf]
      %v206 = vld [vmem:[%s1 + $0x58] sm:$0xf]
      %v207 = vld [vmem:[%s1 + $0x5c] sm:$0xf]
      %v208 = vld [vmem:[%s1 + $0x60] sm:$0xf]
      %v209 = vld [vmem:[%s1 + $0x64] sm:$0xf]
      %v210 = vld [vmem:[%s1 + $0x68] sm:$0xf]
      %v211 = vld [vmem:[%s1 + $0x6c] sm:$0xf]
      %v212 = vld [vmem:[%s1 + $0x70] sm:$0xf]
      %v213 = vld [vmem:[%s1 + $0x74] sm:$0xf]
      %v214 = vld [vmem:[%s1 + $0x78] sm:$0xf]
      %v215 = vld [vmem:[%s1 + $0x7c] sm:$0xf]
      %v216 = vld [vmem:[%s1 + $0x80] sm:$0xf]
      %v217 = vld [vmem:[%s1 + $0x84] sm:$0xf]
      %v218 = vld [vmem:[%s1 + $0x88] sm:$0xf]
      %v219 = vld [vmem:[%s1 + $0x8c] sm:$0xf]
      %v220 = vld [vmem:[%s1 + $0x90] sm:$0xf]
      %v221 = vld [vmem:[%s1 + $0x94] sm:$0xf]
      %v222 = vld [vmem:[%s1 + $0x98] sm:$0xf]
      %v223 = vld [vmem:[%s1 + $0x9c] sm:$0xf]
      %v224 = vld [vmem:[%s1 + $0xa0] sm:$0xf]
      %v225 = vld [vmem:[%s1 + $0xa4] sm:$0xf]
      %v226 = vld [vmem:[%s1 + $0xa8] sm:$0xf]
      %v227 = vld [vmem:[%s1 + $0xac] sm:$0xf]
      %v228 = vld [vmem:[%s1 + $0xb0] sm:$0xf]
      %v229 = vld [vmem:[%s1 + $0xb4] sm:$0xf]
      %v230 = vld [vmem:[%s1 + $0xb8] sm:$0xf]
      %v231 = vld [vmem:[%s1 + $0xbc] sm:$0xf]
      %v232 = vld [vmem:[%s1 + $0xc0] sm:$0xf]
      %v233 = vld [vmem:[%s1 + $0xc4] sm:$0xf]
      %v234 = vld [vmem:[%s1 + $0xc8] sm:$0xf]
      %v235 = vld [vmem:[%s1 + $0xcc] sm:$0xf]
      %v236 = vld [vmem:[%s1 + $0xd0] sm:$0xf]
      %v237 = vld [vmem:[%s1 + $0xd4] sm:$0xf]
      %v238 = vld [vmem:[%s1 + $0xd8] sm:$0xf]
      %v239 = vld [vmem:[%s1 + $0xdc] sm:$0xf]
      %v240 = vld [vmem:[%s1 + $0xe0] sm:$0xf]
      %v241 = vld [vmem:[%s1 + $0xe4] sm:$0xf]
      %v242 = vld [vmem:[%s1 + $0xe8] sm:$0xf]
      %v243 = vld [vmem:[%s1 + $0xec] sm:$0xf]
      %v244 = vld [vmem:[%s1 + $0xf0] sm:$0xf]
      %v245 = vld [vmem:[%s1 + $0xf4] sm:$0xf]
      %v246 = vld [vmem:[%s1 + $0xf8] sm:$0xf]
      %v247 = vld [vmem:[%s1 + $0xfc] sm:$0xf]
      %v248 = vld [vmem:[%s1 + $0x100] sm:$0xf]
      %v249 = vld [vmem:[%s1 + $0x104] sm:$0xf]
      %v250 = vld [vmem:[%s1 + $0x108] sm:$0xf]
      %v251 = vld [vmem:[%s1 + $0x10c] sm:$0xf]
      %v252 = vld [vmem:[%s1 + $0x110] sm:$0xf]
      %v253 = vld [vmem:[%s1 + $0x114] sm:$0xf]
      %v254 = vld [vmem:[%s1 + $0x118] sm:$0xf]
      %v255 = vld [vmem:[%s1 + $0x11c] sm:$0xf]
      %v256 = vld [vmem:[%s1 + $0x120] sm:$0xf]
      %v257 = vld [vmem:[%s1 + $0x124] sm:$0xf]
      %v258 = vld [vmem:[%s1 + $0x128] sm:$0xf]
      %v259 = vld [vmem:[%s1 + $0x12c] sm:$0xf]
      %v260 = vld [vmem:[%s1 + $0x130] sm:$0xf]
      %v261 = vld [vmem:[%s1 + $0x134] sm:$0xf]
      %v262 = vld [vmem:[%s1 + $0x138] sm:$0xf]
      %v263 = vld [vmem:[%s1 + $0x13c] sm:$0xf]
      %v264 = vld [vmem:[%s1 + $0x140] sm:$0xf]
      %v265 = vld [vmem:[%s1 + $0x144] sm:$0xf]
      %v266 = vld [vmem:[%s1 + $0x148] sm:$0xf]
      %v267 = vld [vmem:[%s1 + $0x14c] sm:$0xf]
      %v268 = vld [vmem:[%s1 + $0x150] sm:$0xf]
      %v269 = vld [vmem:[%s1 + $0x154] sm:$0xf]
      %v270 = vld [vmem:[%s1 + $0x158] sm:$0xf]
      %v271 = vld [vmem:[%s1 + $0x15c] sm:$0xf]
      %v272 = vld [vmem:[%s1 + $0x160] sm:$0xf]
      %v273 = vld [vmem:[%s1 + $0x164] sm:$0xf]
      %v274 = vld [vmem:[%s1 + $0x168] sm:$0xf]
      %v275 = vld [vmem:[%s1 + $0x16c] sm:$0xf]
      %v276 = vld [vmem:[%s1 + $0x170] sm:$0xf]
      %v277 = vld [vmem:[%s1 + $0x174] sm:$0xf]
      %v278 = vld [vmem:[%s1 + $0x178] sm:$0xf]
      %v279 = vld [vmem:[%s1 + $0x17c] sm:$0xf]
      %v280 = vld [vmem:[%s1 + $0x180] sm:$0xf]
      %v281 = vld [vmem:[%s1 + $0x184] sm:$0xf]
      %v282 = vld [vmem:[%s2] sm:$0x1]
      %v284 = vlaneseq
      %v285 = vshrl.u32 %v284, 7
      %v286 = vsub.s32 0, %v285
      %v287 = vrot.slane %v282, %v286
      %v387 = vunpack.c.l.b16 %v184
      %v388 = vunpack.c.l.b16 %v185
      %v389 = vunpack.c.l.b16 %v186
      %v390 = vunpack.c.l.b16 %v187
      %v391 = vunpack.c.l.b16 %v188
      %v392 = vunpack.c.l.b16 %v189
      %v393 = vunpack.c.l.b16 %v190
      %v394 = vunpack.c.l.b16 %v191
      %v395 = vunpack.c.l.b16 %v192
      %v396 = vunpack.c.l.b16 %v193
      %v397 = vunpack.c.l.b16 %v194
      %v398 = vunpack.c.l.b16 %v195
      %v399 = vunpack.c.l.b16 %v196
      %v400 = vunpack.c.l.b16 %v197
      %v401 = vunpack.c.l.b16 %v198
      %v402 = vunpack.c.l.b16 %v199
      %v403 = vunpack.c.l.b16 %v200
      %v404 = vunpack.c.l.b16 %v201
      %v405 = vunpack.c.l.b16 %v202
      %v406 = vunpack.c.l.b16 %v203
      %v407 = vunpack.c.l.b16 %v204
      %v408 = vunpack.c.l.b16 %v205
      %v409 = vunpack.c.l.b16 %v206
      %v410 = vunpack.c.l.b16 %v207
      %v411 = vunpack.c.l.b16 %v208
      %v412 = vunpack.c.l.b16 %v209
      %v413 = vunpack.c.l.b16 %v210
      %v414 = vunpack.c.l.b16 %v211
      %v415 = vunpack.c.l.b16 %v212
      %v416 = vunpack.c.l.b16 %v213
      %v417 = vunpack.c.l.b16 %v214
      %v418 = vunpack.c.l.b16 %v215
      %v419 = vunpack.c.l.b16 %v216
      %v420 = vunpack.c.l.b16 %v217
      %v421 = vunpack.c.l.b16 %v218
      %v422 = vunpack.c.l.b16 %v219
      %v423 = vunpack.c.l.b16 %v220
      %v424 = vunpack.c.l.b16 %v221
      %v425 = vunpack.c.l.b16 %v222
      %v426 = vunpack.c.l.b16 %v223
      %v427 = vunpack.c.l.b16 %v224
      %v428 = vunpack.c.l.b16 %v225
      %v429 = vunpack.c.l.b16 %v226
      %v430 = vunpack.c.l.b16 %v227
      %v431 = vunpack.c.l.b16 %v228
      %v432 = vunpack.c.l.b16 %v229
      %v433 = vunpack.c.l.b16 %v230
      %v434 = vunpack.c.l.b16 %v231
      %v435 = vunpack.c.l.b16 %v232
      %v436 = vunpack.c.l.b16 %v233
      %v437 = vunpack.c.l.b16 %v234
      %v438 = vunpack.c.l.b16 %v235
      %v439 = vunpack.c.l.b16 %v236
      %v440 = vunpack.c.l.b16 %v237
      %v441 = vunpack.c.l.b16 %v238
      %v442 = vunpack.c.l.b16 %v239
      %v443 = vunpack.c.l.b16 %v240
      %v444 = vunpack.c.l.b16 %v241
      %v445 = vunpack.c.l.b16 %v242
      %v446 = vunpack.c.l.b16 %v243
      %v447 = vunpack.c.l.b16 %v244
      %v448 = vunpack.c.l.b16 %v245
      %v449 = vunpack.c.l.b16 %v246
      %v450 = vunpack.c.l.b16 %v247
      %v451 = vunpack.c.l.b16 %v248
      %v452 = vunpack.c.l.b16 %v249
      %v453 = vunpack.c.l.b16 %v250
      %v454 = vunpack.c.l.b16 %v251
      %v455 = vunpack.c.l.b16 %v252
      %v456 = vunpack.c.l.b16 %v253
      %v457 = vunpack.c.l.b16 %v254
      %v458 = vunpack.c.l.b16 %v255
      %v459 = vunpack.c.l.b16 %v256
      %v460 = vunpack.c.l.b16 %v257
      %v461 = vunpack.c.l.b16 %v258
      %v462 = vunpack.c.l.b16 %v259
      %v463 = vunpack.c.l.b16 %v260
      %v464 = vunpack.c.l.b16 %v261
      %v465 = vunpack.c.l.b16 %v262
      %v466 = vunpack.c.l.b16 %v263
      %v467 = vunpack.c.l.b16 %v264
      %v468 = vunpack.c.l.b16 %v265
      %v469 = vunpack.c.l.b16 %v266
      %v470 = vunpack.c.l.b16 %v267
      %v471 = vunpack.c.l.b16 %v268
      %v472 = vunpack.c.l.b16 %v269
      %v473 = vunpack.c.l.b16 %v270
      %v474 = vunpack.c.l.b16 %v271
      %v475 = vunpack.c.l.b16 %v272
      %v476 = vunpack.c.l.b16 %v273
      %v477 = vunpack.c.l.b16 %v274
      %v478 = vunpack.c.l.b16 %v275
      %v479 = vunpack.c.l.b16 %v276
      %v480 = vunpack.c.l.b16 %v277
      %v481 = vunpack.c.l.b16 %v278
      %v482 = vunpack.c.l.b16 %v279
      %v483 = vunpack.c.l.b16 %v280
      %v484 = vunpack.c.l.b16 %v281
      %v485 = vpack.c.b16 %v388, %v387
      %v486 = vpack.c.b16 %v390, %v389
      %v487 = vpack.c.b16 %v392, %v391
      %v488 = vpack.c.b16 %v394, %v393
      %v489 = vpack.c.b16 %v396, %v395
      %v490 = vpack.c.b16 %v398, %v397
      %v491 = vpack.c.b16 %v400, %v399
      %v492 = vpack.c.b16 %v402, %v401
      %v493 = vpack.c.b16 %v404, %v403
      %v494 = vpack.c.b16 %v406, %v405
      %v495 = vpack.c.b16 %v408, %v407
      %v496 = vpack.c.b16 %v410, %v409
      %v497 = vpack.c.b16 %v412, %v411
      %v498 = vpack.c.b16 %v414, %v413
      %v499 = vpack.c.b16 %v416, %v415
      %v500 = vpack.c.b16 %v418, %v417
      %v501 = vpack.c.b16 %v420, %v419
      %v502 = vpack.c.b16 %v422, %v421
      %v503 = vpack.c.b16 %v424, %v423
      %v504 = vpack.c.b16 %v426, %v425
      %v505 = vpack.c.b16 %v428, %v427
      %v506 = vpack.c.b16 %v430, %v429
      %v507 = vpack.c.b16 %v432, %v431
      %v508 = vpack.c.b16 %v434, %v433
      %v509 = vpack.c.b16 %v436, %v435
      %v510 = vpack.c.b16 %v438, %v437
      %v511 = vpack.c.b16 %v440, %v439
      %v512 = vpack.c.b16 %v442, %v441
      %v513 = vpack.c.b16 %v444, %v443
      %v514 = vpack.c.b16 %v446, %v445
      %v515 = vpack.c.b16 %v448, %v447
      %v516 = vpack.c.b16 %v450, %v449
      %v517 = vpack.c.b16 %v452, %v451
      %v518 = vpack.c.b16 %v454, %v453
      %v519 = vpack.c.b16 %v456, %v455
      %v520 = vpack.c.b16 %v458, %v457
      %v521 = vpack.c.b16 %v460, %v459
      %v522 = vpack.c.b16 %v462, %v461
      %v523 = vpack.c.b16 %v464, %v463
      %v524 = vpack.c.b16 %v466, %v465
      %v525 = vpack.c.b16 %v468, %v467
      %v526 = vpack.c.b16 %v470, %v469
      %v527 = vpack.c.b16 %v472, %v471
      %v528 = vpack.c.b16 %v474, %v473
      %v529 = vpack.c.b16 %v476, %v475
      %v530 = vpack.c.b16 %v478, %v477
      %v531 = vpack.c.b16 %v480, %v479
      %v532 = vpack.c.b16 %v482, %v481
      %v533 = vpack.c.b16 %v484, %v483
      %vm583 = vcmask 130048
      %v585 = vsel %vm583, %v183, 0
      %587 = vmatprep.subr.bf16.mxu0 0
      %588 = vmatpush1.bf16.msra.mxu0 %v492
      %589 = vmatprep.subr.bf16.mxu0 0
      %590 = vmatpush1.bf16.msra.mxu0 %v491
      %591 = vmatprep.subr.bf16.mxu0 0
      %592 = vmatpush1.bf16.msra.mxu0 %v490
      %593 = vmatprep.subr.bf16.mxu0 0
      %594 = vmatpush1.bf16.msra.mxu0 %v489
      %595 = vmatprep.subr.bf16.mxu0 0
      %596 = vmatpush1.bf16.msra.mxu0 %v488
      %597 = vmatprep.subr.bf16.mxu0 0
      %598 = vmatpush1.bf16.msra.mxu0 %v487
      %599 = vmatprep.subr.bf16.mxu0 0
      %600 = vmatpush1.bf16.msra.mxu0 %v486
      %601 = vmatprep.subr.bf16.mxu0 0
      %602 = vmatpush1.bf16.msra.mxu0 %v485
      %603 = vmatprep.subr.bf16.mxu0 0
      %604 = vmatpush2.bf16.msra.mxu0 %v500
      %605 = vmatprep.subr.bf16.mxu0 0
      %606 = vmatpush2.bf16.msra.mxu0 %v499
      %607 = vmatprep.subr.bf16.mxu0 0
      %608 = vmatpush2.bf16.msra.mxu0 %v498
      %609 = vmatprep.subr.bf16.mxu0 0
      %610 = vmatpush2.bf16.msra.mxu0 %v497
      %611 = vmatprep.subr.bf16.mxu0 0
      %612 = vmatpush2.bf16.msra.mxu0 %v496
      %613 = vmatprep.subr.bf16.mxu0 0
      %614 = vmatpush2.bf16.msra.mxu0 %v495
      %615 = vmatprep.subr.bf16.mxu0 0
      %616 = vmatpush2.bf16.msra.mxu0 %v494
      %617 = vmatprep.subr.bf16.mxu0 0
      %618 = vmatpush2.bf16.msra.mxu0 %v493
      %619 = vmatprep.mubr.bf16.mxu0 %v178
      %620 = vmatmul.mubr.bf16.gmra.mxu0 %v177
      %v621 = vpop.f32.mrf.mxu0
      %v622 = vadd.f32 %v287, %v621
      %v623 = vpop.f32.mrf.mxu0
      %v624 = vpop.f32.mrf.mxu0
      %v625 = vpop.f32.mrf.mxu0
      %626 = vdwg.mxu0
      %627 = vmatprep.subr.bf16.mxu0 0
      %628 = vmatpush1.bf16.msra.mxu0 %v508
      %629 = vmatprep.subr.bf16.mxu0 0
      %630 = vmatpush1.bf16.msra.mxu0 %v507
      %631 = vmatprep.subr.bf16.mxu0 0
      %632 = vmatpush1.bf16.msra.mxu0 %v506
      %633 = vmatprep.subr.bf16.mxu0 0
      %634 = vmatpush1.bf16.msra.mxu0 %v505
      %635 = vmatprep.subr.bf16.mxu0 0
      %636 = vmatpush1.bf16.msra.mxu0 %v504
      %637 = vmatprep.subr.bf16.mxu0 0
      %638 = vmatpush1.bf16.msra.mxu0 %v503
      %639 = vmatprep.subr.bf16.mxu0 0
      %640 = vmatpush1.bf16.msra.mxu0 %v502
      %641 = vmatprep.subr.bf16.mxu0 0
      %642 = vmatpush1.bf16.msra.mxu0 %v501
      %643 = vmatprep.subr.bf16.mxu0 0
      %644 = vmatpush2.bf16.msra.mxu0 %v516
      %645 = vmatprep.subr.bf16.mxu0 0
      %646 = vmatpush2.bf16.msra.mxu0 %v515
      %647 = vmatprep.subr.bf16.mxu0 0
      %648 = vmatpush2.bf16.msra.mxu0 %v514
      %649 = vmatprep.subr.bf16.mxu0 0
      %650 = vmatpush2.bf16.msra.mxu0 %v513
      %651 = vmatprep.subr.bf16.mxu0 0
      %652 = vmatpush2.bf16.msra.mxu0 %v512
      %653 = vmatprep.subr.bf16.mxu0 0
      %654 = vmatpush2.bf16.msra.mxu0 %v511
      %655 = vmatprep.subr.bf16.mxu0 0
      %656 = vmatpush2.bf16.msra.mxu0 %v510
      %657 = vmatprep.subr.bf16.mxu0 0
      %658 = vmatpush2.bf16.msra.mxu0 %v509
      %659 = vmatprep.mubr.bf16.mxu0 %v180
      %660 = vmatmul.mubr.bf16.gmra.mxu0 %v179
      %v661 = vpop.f32.mrf.mxu0
      %v662 = vadd.f32 %v622, %v661
      %v663 = vpop.f32.mrf.mxu0
      %v664 = vpop.f32.mrf.mxu0
      %v665 = vpop.f32.mrf.mxu0
      %666 = vdwg.mxu0
      %667 = vmatprep.subr.bf16.mxu0 0
      %668 = vmatpush1.bf16.msra.mxu0 %v524
      %669 = vmatprep.subr.bf16.mxu0 0
      %670 = vmatpush1.bf16.msra.mxu0 %v523
      %671 = vmatprep.subr.bf16.mxu0 0
      %672 = vmatpush1.bf16.msra.mxu0 %v522
      %673 = vmatprep.subr.bf16.mxu0 0
      %674 = vmatpush1.bf16.msra.mxu0 %v521
      %675 = vmatprep.subr.bf16.mxu0 0
      %676 = vmatpush1.bf16.msra.mxu0 %v520
      %677 = vmatprep.subr.bf16.mxu0 0
      %678 = vmatpush1.bf16.msra.mxu0 %v519
      %679 = vmatprep.subr.bf16.mxu0 0
      %680 = vmatpush1.bf16.msra.mxu0 %v518
      %681 = vmatprep.subr.bf16.mxu0 0
      %682 = vmatpush1.bf16.msra.mxu0 %v517
      %683 = vmatprep.subr.bf16.mxu0 0
      %684 = vmatpush2.bf16.msra.mxu0 %v532
      %685 = vmatprep.subr.bf16.mxu0 0
      %686 = vmatpush2.bf16.msra.mxu0 %v531
      %687 = vmatprep.subr.bf16.mxu0 0
      %688 = vmatpush2.bf16.msra.mxu0 %v530
      %689 = vmatprep.subr.bf16.mxu0 0
      %690 = vmatpush2.bf16.msra.mxu0 %v529
      %691 = vmatprep.subr.bf16.mxu0 0
      %692 = vmatpush2.bf16.msra.mxu0 %v528
      %693 = vmatprep.subr.bf16.mxu0 0
      %694 = vmatpush2.bf16.msra.mxu0 %v527
      %695 = vmatprep.subr.bf16.mxu0 0
      %696 = vmatpush2.bf16.msra.mxu0 %v526
      %697 = vmatprep.subr.bf16.mxu0 0
      %698 = vmatpush2.bf16.msra.mxu0 %v525
      %699 = vmatprep.mubr.bf16.mxu0 %v182
      %700 = vmatmul.mubr.bf16.gmra.mxu0 %v181
      %v701 = vpop.f32.mrf.mxu0
      %v702 = vadd.f32 %v662, %v701
      %v703 = vpop.f32.mrf.mxu0
      %v704 = vpop.f32.mrf.mxu0
      %v705 = vpop.f32.mrf.mxu0
      %706 = vdwg.mxu0
      %707 = vmatprep.subr.bf16.mxu0 0
      %708 = vmatpush1.bf16.msra.mxu0 0
      %709 = vmatprep.subr.bf16.mxu0 0
      %710 = vmatpush1.bf16.msra.mxu0 0
      %711 = vmatprep.subr.bf16.mxu0 0
      %712 = vmatpush1.bf16.msra.mxu0 0
      %713 = vmatprep.subr.bf16.mxu0 0
      %714 = vmatpush1.bf16.msra.mxu0 0
      %715 = vmatprep.subr.bf16.mxu0 0
      %716 = vmatpush1.bf16.msra.mxu0 0
      %717 = vmatprep.subr.bf16.mxu0 0
      %718 = vmatpush1.bf16.msra.mxu0 0
      %719 = vmatprep.subr.bf16.mxu0 0
      %720 = vmatpush1.bf16.msra.mxu0 0
      %721 = vmatprep.subr.bf16.mxu0 0
      %722 = vmatpush1.bf16.msra.mxu0 %v533
      %723 = vmatprep.subr.bf16.mxu0 0
      %724 = vmatpush2.bf16.msra.mxu0 0
      %725 = vmatprep.subr.bf16.mxu0 0
      %726 = vmatpush2.bf16.msra.mxu0 0
      %727 = vmatprep.subr.bf16.mxu0 0
      %728 = vmatpush2.bf16.msra.mxu0 0
      %729 = vmatprep.subr.bf16.mxu0 0
      %730 = vmatpush2.bf16.msra.mxu0 0
      %731 = vmatprep.subr.bf16.mxu0 0
      %732 = vmatpush2.bf16.msra.mxu0 0
      %733 = vmatprep.subr.bf16.mxu0 0
      %734 = vmatpush2.bf16.msra.mxu0 0
      %735 = vmatprep.subr.bf16.mxu0 0
      %736 = vmatpush2.bf16.msra.mxu0 0
      %737 = vmatprep.subr.bf16.mxu0 0
      %738 = vmatpush2.bf16.msra.mxu0 0
      %739 = vmatprep.mubr.bf16.mxu0 0
      %740 = vmatmul.mubr.bf16.gmra.mxu0 %v585
      %v741 = vpop.f32.mrf.mxu0
      %v742 = vadd.f32 %v702, %v741
      %v743 = vpop.f32.mrf.mxu0
      %v744 = vpop.f32.mrf.mxu0
      %v745 = vpop.f32.mrf.mxu0
      %746 = vdwg.mxu0
      %747 = vmax.xlane.f32.xlu0 %v742
      %v748 = vpop.xlane.xlu0 %747
      %v749 = vsub.f32 %v742, %v748
      %v750 = vmul.f32 %v749, 1.442695
      %v751 = vpow.pop %v750
      %752 = vadd.xlane.f32.xlu0 %v751
      %v753 = vpop.xlane.xlu0 %752
      %v754 = vrcp.pop %v753
      %v755 = vmul.f32 %v751, %v754
      %v756 = vpack.c.bf16 %v755, %v755
      %757 = vst [vmem:[%s168] sm:$0xf] %v756
      %p758 = scmp.lt.s32.totalorder %s14, 1
      %s759 = scalar_select %p758, %s14, 1
      %s760 = smul.addr %s759, 4
      %s761 = scalar_lea.vmem %s3, %s760
      // Predicated region
      $region33: #{kron_layer_forward.1} parent=31 // pred_check
        %p762 = pneg %p100
      $region34: #{kron_layer_forward.1} parent=31 // pred_check_branch
        %764 = sbr.rel (%p762) target = $region36
      $region35: #{kron_layer_forward.1} parent=31 // pred_region
        _
      $region36: #{kron_layer_forward.1} parent=31 // pred_fallthru
        _
    $region32: #{kron_layer_forward.1} parent=5 // pred_fallthru
      _
    %p765 = scmp.le.s32.totalorder 2, %s9
    // Predicated region
    $region37: #{kron_layer_forward.1} parent=5 // pred_check
      %p766 = pneg %p765
    $region38: #{kron_layer_forward.1} parent=5 // pred_check_branch
      %768 = sbr.rel (%p766) target = $region40
    $region39: #{kron_layer_forward.1} parent=5 // pred_region
      %s769 = ssub.s32 %s9, 2
      // Predicated region
      $region41: #{kron_layer_forward.1} parent=39 // pred_check
        %p770 = pneg %p106
      $region42: #{kron_layer_forward.1} parent=39 // pred_check_branch
        %772 = sbr.rel (%p770) target = $region44
      $region43: #{kron_layer_forward.1} parent=39 // pred_region
        %p773 = scmp.lt.s32.totalorder %s15, 1
        %s774 = scalar_select %p773, %s15, 1
        %s775 = smul.addr %s774, 4
        %s776 = scalar_lea.vmem %s3, %s775
      $region44: #{kron_layer_forward.1} parent=39 // pred_fallthru
        _
    $region40: #{kron_layer_forward.1} parent=5 // pred_fallthru
      _
  $region6: #{kron_layer_forward.1} parent=0 // loop_footer
    %s13 = sadd.s32 1, %s9
  $region7: #{kron_layer_forward.1} parent=0 // loop_footer_branch
    %8 = sbr.rel target = $region3
  $region8: #{kron_layer_forward.1} parent=0 // loop_exit
    _

</llo_original>
